<compile_context>
chip_gen: v5e
topology: v5e:2x2
jax: 0.10.0
libtpu: 0.0.40
codegen_flags: <defaults>
</compile_context>

<pallas_src>
import math
import functools

import jax
import jax.numpy as jnp
from jax.experimental import pallas as pl
from jax.experimental.pallas import tpu as pltpu


def _eca_kernel_size(channels: int, gamma: int = 2, b: int = 1) -> int:
    t = int(abs((math.log(channels, 2) + b) / gamma))
    return t if t % 2 else t + 1


def _round_up(x: int, m: int) -> int:
    return ((x + m - 1) // m) * m


# ---------------------------------------------------------------------------
# Shared finalize: k-tap zero-padded cross-correlation over channels + sigmoid.
# pooled: (C, 1) f32, w_ref: (k,) f32 in SMEM.  Matches
# torch.nn.Conv1d(1, 1, k, padding=(k-1)//2, bias=False).
# ---------------------------------------------------------------------------
def _conv_sigmoid(pooled, w_ref, *, k, pad, C):
    if pad > 0:
        z = jnp.zeros((pad, 1), jnp.float32)
        padded = jnp.concatenate([z, pooled, z], axis=0)      # (C + 2*pad, 1)
    else:
        padded = pooled
    y = w_ref[0] * padded[0:C, :]
    for j in range(1, k):
        y = y + w_ref[j] * padded[j:j + C, :]
    return jax.nn.sigmoid(y)                                   # (C, 1)


# ---------------------------------------------------------------------------
# Fused single-pass kernel: one batch slab per grid step.
#   x_ref: (C, HW) native dtype, w_ref: (k,) f32 SMEM, o_ref: (C, HW) native.
# ---------------------------------------------------------------------------
def _fused_eca_kernel(x_ref, w_ref, o_ref, *, k, pad, inv_hw, C):
    xf = x_ref[...].astype(jnp.float32)                        # (C, HW)
    pooled = jnp.sum(xf, axis=1, keepdims=True) * inv_hw       # (C, 1) mean
    scale = _conv_sigmoid(pooled, w_ref, k=k, pad=pad, C=C)    # (C, 1)
    o_ref[...] = (xf * scale).astype(o_ref.dtype)


# ---------------------------------------------------------------------------
# Two-pass fallback, kernel 1: tiled spatial reduce (+ conv + sigmoid at end).
#   x_ref: (C, tn) native dtype tile of batch b, acc_ref: (C, 128) f32 scratch,
#   scale_ref: (C, 1) f32 per-batch output.
# ---------------------------------------------------------------------------
def _pool_conv_sigmoid_kernel(x_ref, w_ref, scale_ref, acc_ref, *,
                              k, pad, inv_hw, C, tn, HW):
    t = pl.program_id(1)

    @pl.when(t == 0)
    def _():
        acc_ref[...] = jnp.zeros_like(acc_ref)

    x = x_ref[...].astype(jnp.float32)                         # (C, tn)
    if HW % tn != 0:
        # Last tile is ragged: OOB lanes contain garbage -> mask before summing.
        lane = jax.lax.broadcasted_iota(jnp.int32, (C, tn), 1) + t * tn
        x = jnp.where(lane < HW, x, 0.0)

    # Fold the tn/128 lane groups with pure VPU adds (no per-tile XLU reduce).
    partial = x[:, 0:128]
    for g in range(1, tn // 128):
        partial = partial + x[:, g * 128:(g + 1) * 128]
    acc_ref[...] += partial

    @pl.when(t == pl.num_programs(1) - 1)
    def _():
        pooled = jnp.sum(acc_ref[...], axis=1, keepdims=True) * inv_hw  # (C, 1)
        scale_ref[...] = _conv_sigmoid(pooled, w_ref, k=k, pad=pad, C=C)


# ---------------------------------------------------------------------------
# Two-pass fallback, kernel 2: out = x * scale (broadcast over lanes).
# Partial edge tiles are handled by Pallas' masked stores.
# ---------------------------------------------------------------------------
def _apply_scale_kernel(x_ref, s_ref, o_ref):
    o_ref[...] = (x_ref[...].astype(jnp.float32) * s_ref[...]).astype(o_ref.dtype)


# ---------------------------------------------------------------------------
# Module equivalent.
# ---------------------------------------------------------------------------
class EfficientChannelAttentionPallas:
    def __init__(self, channels: int, gamma: int = 2, b: int = 1, *,
                 key=None, fused_vmem_budget_bytes: int = 40 * 1024 * 1024):
        if key is None:
            key = jax.random.PRNGKey(0)
        self.channels = channels
        self.k = _eca_kernel_size(channels, gamma, b)
        self.pad = (self.k - 1) // 2
        self.fused_vmem_budget_bytes = fused_vmem_budget_bytes
        # torch Conv1d default init: kaiming_uniform(a=sqrt(5)) -> U(-1/sqrt(fan_in), .)
        bound = 1.0 / math.sqrt(self.k)
        self.weight = jax.random.uniform(key, (self.k,), jnp.float32, -bound, bound)

    def __call__(self, x):
        B, C, H, W = x.shape
        assert C == self.channels
        HW = H * W
        itemsize = jnp.dtype(x.dtype).itemsize

        xf = x.reshape(B, C, HW)                    # native dtype, no pad, no cast

        # ------------------------------------------------------------------
        # Fused single-pass path: one (C, HW) slab per grid step.
        # Footprint estimate: in + out blocks double-buffered (native dtype)
        # plus f32 temporaries of one slab; keep under the budget (safe for
        # v7x's 64 MiB physical VMEM with vmem_limit_bytes=48 MiB).
        # ------------------------------------------------------------------
        slab_f32 = C * HW * 4
        fused_est = 4 * C * HW * itemsize + 2 * slab_f32
        if fused_est <= self.fused_vmem_budget_bytes:
            fused = functools.partial(
                _fused_eca_kernel, k=self.k, pad=self.pad,
                inv_hw=1.0 / float(HW), C=C)
            out = pl.pallas_call(
                fused,
                out_shape=jax.ShapeDtypeStruct((B, C, HW), x.dtype),
                grid_spec=pltpu.PrefetchScalarGridSpec(
                    num_scalar_prefetch=0,
                    grid=(B,),
                    in_specs=[
                        pl.BlockSpec((pl.Squeezed(), C, HW), lambda bi: (bi, 0, 0)),
                        pl.BlockSpec(memory_space=pltpu.MemorySpace.SMEM),
                    ],
                    out_specs=pl.BlockSpec((pl.Squeezed(), C, HW),
                                           lambda bi: (bi, 0, 0)),
                ),
                compiler_params=pltpu.CompilerParams(
                    dimension_semantics=("parallel",),
                    vmem_limit_bytes=48 * 1024 * 1024),
                cost_estimate=pl.CostEstimate(
                    flops=2 * B * C * HW + 2 * B * C * self.k,
                    transcendentals=B * C,
                    bytes_accessed=2 * B * C * HW * itemsize),
            )(xf, self.weight)
            return out.reshape(B, C, H, W)

        # ------------------------------------------------------------------
        # Two-pass fallback (very large feature maps): tiled pool pass +
        # broadcast-multiply apply pass.  cdiv grid, no padding, no slicing.
        # ------------------------------------------------------------------
        tn = min(_round_up(HW, 128), 2048)
        # keep a (C, tn) block modest so double-buffered in+out blocks fit the
        # default scoped VMEM even on v5e (16 MiB)
        cap = max(128, ((2 * 1024 * 1024) // (4 * C)) // 128 * 128)
        tn = max(128, min(tn, cap))
        n_tiles = pl.cdiv(HW, tn)

        pool_kernel = functools.partial(
            _pool_conv_sigmoid_kernel,
            k=self.k, pad=self.pad, inv_hw=1.0 / float(HW), C=C, tn=tn, HW=HW)

        # --- kernel 1: per-batch channel-attention scale (C, 1) ------------
        scale = pl.pallas_call(
            pool_kernel,
            out_shape=jax.ShapeDtypeStruct((B, C, 1), jnp.float32),
            grid_spec=pltpu.PrefetchScalarGridSpec(
                num_scalar_prefetch=0,
                grid=(B, n_tiles),
                in_specs=[
                    pl.BlockSpec((pl.Squeezed(), C, tn), lambda bi, ti: (bi, 0, ti)),
                    pl.BlockSpec(memory_space=pltpu.MemorySpace.SMEM),
                ],
                out_specs=pl.BlockSpec((pl.Squeezed(), C, 1),
                                       lambda bi, ti: (bi, 0, 0)),
                scratch_shapes=[pltpu.VMEM((C, 128), jnp.float32)],
            ),
            compiler_params=pltpu.CompilerParams(
                dimension_semantics=("parallel", "arbitrary")),
            cost_estimate=pl.CostEstimate(
                flops=B * C * HW + 2 * B * C * self.k,
                transcendentals=B * C,
                bytes_accessed=B * C * HW * itemsize + B * C * 4),
        )(xf, self.weight)

        # --- kernel 2: out = x * scale --------------------------------------
        out = pl.pallas_call(
            _apply_scale_kernel,
            out_shape=jax.ShapeDtypeStruct((B, C, HW), x.dtype),
            grid_spec=pltpu.PrefetchScalarGridSpec(
                num_scalar_prefetch=0,
                grid=(B, n_tiles),
                in_specs=[
                    pl.BlockSpec((pl.Squeezed(), C, tn), lambda bi, ti: (bi, 0, ti)),
                    pl.BlockSpec((pl.Squeezed(), C, 1), lambda bi, ti: (bi, 0, 0)),
                ],
                out_specs=pl.BlockSpec((pl.Squeezed(), C, tn),
                                       lambda bi, ti: (bi, 0, ti)),
            ),
            compiler_params=pltpu.CompilerParams(
                dimension_semantics=("parallel", "parallel")),
            cost_estimate=pl.CostEstimate(
                flops=B * C * HW,
                transcendentals=0,
                bytes_accessed=2 * B * C * HW * itemsize + B * C * 4),
        )(xf, scale)

        return out.reshape(B, C, H, W)


if __name__ == "__main__":
    key = jax.random.PRNGKey(0)
    k_x, k_w, k_x2 = jax.random.split(key, 3)

    def ref_eca(x, weight, k, pad):
        C = x.shape[1]
        pooled = x.mean(axis=(2, 3))                         # [B, C]
        pp = jnp.pad(pooled, ((0, 0), (pad, pad)))
        conv = sum(weight[j] * pp[:, j:j + C] for j in range(k))
        return x * jax.nn.sigmoid(conv)[:, :, None, None]

    # --- Test A: fused single-pass path (aligned spatial) -------------------
    # C=32 gives conv kernel size k=3 (C=4 would degenerate to k=1).
    B, C, H, W = 2, 32, 16, 16
    x = jax.random.normal(k_x, (B, C, H, W), jnp.float32)
    eca = EfficientChannelAttentionPallas(channels=C, gamma=2, b=1, key=k_w)
    y = jax.block_until_ready(eca(x))
    assert y.shape == (B, C, H, W), y.shape
    assert bool(jnp.all(jnp.isfinite(y)))
    ref = ref_eca(x, eca.weight, eca.k, eca.pad)
    err = float(jnp.max(jnp.abs(y - ref)))
    assert bool(jnp.allclose(y, ref, rtol=1e-5, atol=1e-5)), err

    # --- Test B: two-pass fallback, multi-tile + ragged last tile -----------
    # HW = 48*48 = 2304 -> tn = 2048, 2 spatial tiles, masked last tile.
    B2, C2, H2, W2 = 2, 32, 48, 48
    x2 = jax.random.normal(k_x2, (B2, C2, H2, W2), jnp.float32)
    eca2 = EfficientChannelAttentionPallas(channels=C2, gamma=2, b=1, key=k_w,
                                           fused_vmem_budget_bytes=0)
    y2 = jax.block_until_ready(eca2(x2))
    assert y2.shape == (B2, C2, H2, W2), y2.shape
    ref2 = ref_eca(x2, eca2.weight, eca2.k, eca2.pad)
    err2 = float(jnp.max(jnp.abs(y2 - ref2)))
    assert bool(jnp.allclose(y2, ref2, rtol=1e-5, atol=1e-5)), err2

    print("KERNEL_OK")
</pallas_src>

<mosaic_0001>
module attributes {stable_mosaic.version = 11 : i64} {
  func.func @_fused_eca_kernel(%arg0: i32, %arg1: memref<1x32x256xf32, #tpu.memory_space<vmem>>, %arg2: memref<3xf32, #tpu.memory_space<smem>>, %arg3: memref<1x32x256xf32, #tpu.memory_space<vmem>>) attributes {dimension_semantics = [#tpu.dimension_semantics<parallel>], iteration_bounds = array<i64: 2>, scalar_prefetch = 0 : i64, scratch_operands = 0 : i64, tpu.core_type = #tpu.core_type<tc>, window_params = [{transform_indices = @transform_0, window_bounds = array<i64: 1, 32, 256>}, {transform_indices = @transform_1, window_bounds = array<i64: 3>}, {transform_indices = @transform_2, window_bounds = array<i64: 1, 32, 256>}]} {
    %c0 = arith.constant 0 : index
    %c0_0 = arith.constant 0 : index
    %c0_1 = arith.constant 0 : index
    %0 = vector.load %arg1[%c0, %c0_0, %c0_1] : memref<1x32x256xf32, #tpu.memory_space<vmem>>, vector<1x32x256xf32>
    %1 = vector.shape_cast %0 : vector<1x32x256xf32> to vector<32x256xf32>
    %cst = arith.constant dense<0.000000e+00> : vector<32xf32>
    %2 = vector.multi_reduction <add>, %1, %cst [1] : vector<32x256xf32> to vector<32xf32>
    %3 = vector.shape_cast %2 : vector<32xf32> to vector<32x1xf32>
    %cst_2 = arith.constant 3.906250e-03 : f32
    %4 = vector.broadcast %cst_2 : f32 to vector<32x1xf32>
    %5 = arith.mulf %3, %4 : vector<32x1xf32>
    %cst_3 = arith.constant 0.000000e+00 : f32
    %6 = vector.broadcast %cst_3 : f32 to vector<1x1xf32>
    %7 = tpu.concatenate %6, %5, %6 in 0 : vector<1x1xf32>, vector<32x1xf32>, vector<1x1xf32> -> vector<34x1xf32>
    %c0_4 = arith.constant 0 : index
    %8 = memref.load %arg2[%c0_4] : memref<3xf32, #tpu.memory_space<smem>>
    %9 = vector.extract_strided_slice %7 {offsets = [0, 0], sizes = [32, 1], strides = [1, 1]} : vector<34x1xf32> to vector<32x1xf32>
    %10 = vector.broadcast %8 : f32 to vector<32x1xf32>
    %11 = arith.mulf %10, %9 : vector<32x1xf32>
    %c1 = arith.constant 1 : index
    %12 = memref.load %arg2[%c1] : memref<3xf32, #tpu.memory_space<smem>>
    %13 = vector.extract_strided_slice %7 {offsets = [1, 0], sizes = [32, 1], strides = [1, 1]} : vector<34x1xf32> to vector<32x1xf32>
    %14 = vector.broadcast %12 : f32 to vector<32x1xf32>
    %15 = arith.mulf %14, %13 : vector<32x1xf32>
    %16 = arith.addf %11, %15 : vector<32x1xf32>
    %c2 = arith.constant 2 : index
    %17 = memref.load %arg2[%c2] : memref<3xf32, #tpu.memory_space<smem>>
    %18 = vector.extract_strided_slice %7 {offsets = [2, 0], sizes = [32, 1], strides = [1, 1]} : vector<34x1xf32> to vector<32x1xf32>
    %19 = vector.broadcast %17 : f32 to vector<32x1xf32>
    %20 = arith.mulf %19, %18 : vector<32x1xf32>
    %21 = arith.addf %16, %20 : vector<32x1xf32>
    %22 = arith.negf %21 : vector<32x1xf32>
    %23 = math.exp %22 : vector<32x1xf32>
    %cst_5 = arith.constant 1.000000e+00 : f32
    %24 = vector.broadcast %cst_5 : f32 to vector<32x1xf32>
    %25 = arith.addf %24, %23 : vector<32x1xf32>
    %26 = arith.divf %24, %25 : vector<32x1xf32>
    %27 = vector.broadcast %26 : vector<32x1xf32> to vector<32x256xf32>
    %28 = arith.mulf %1, %27 : vector<32x256xf32>
    %c0_6 = arith.constant 0 : index
    %c0_7 = arith.constant 0 : index
    %c0_8 = arith.constant 0 : index
    %29 = vector.load %arg3[%c0_6, %c0_7, %c0_8] : memref<1x32x256xf32, #tpu.memory_space<vmem>>, vector<1x32x256xf32>
    %30 = vector.shape_cast %29 : vector<1x32x256xf32> to vector<32x256xf32>
    %31 = vector.shape_cast %28 : vector<32x256xf32> to vector<1x32x256xf32>
    tpu.vector_store %arg3[%c0_6, %c0_7, %c0_8], %31 {strides = array<i32>} : memref<1x32x256xf32, #tpu.memory_space<vmem>>, vector<1x32x256xf32>,
    return
  }
  func.func @transform_0(%arg0: i32) -> (i32, i32, i32) {
    %c0_i32 = arith.constant 0 : i32
    %c0_i32_0 = arith.constant 0 : i32
    %c0_i32_1 = arith.constant 0 : i32
    return %arg0, %c0_i32, %c0_i32_0 : i32, i32, i32
  }
  func.func @transform_1(%arg0: i32) -> i32 {
    %c0_i32 = arith.constant 0 : i32
    %c0_i32_0 = arith.constant 0 : i32
    return %c0_i32 : i32
  }
  func.func @transform_2(%arg0: i32) -> (i32, i32, i32) {
    %c0_i32 = arith.constant 0 : i32
    %c0_i32_0 = arith.constant 0 : i32
    %c0_i32_1 = arith.constant 0 : i32
    return %arg0, %c0_i32, %c0_i32_0 : i32, i32, i32
  }
}

</mosaic_0001>

<llo_original>
// kernel: tpu_custom_call.1
$region0: #{tpu_custom_call.1}
  #allocation0 [shape = 'u32[]', space=smem, size = 0x4, offset = 0x4, fixed_abs, tag = 'smem constant byte address 0x4 - core index']
  #allocation1 [shape = 'u32[72,128]{1,0:T(1,128)}', space=vmem, size = 0x9000, scoped, tag = 'internal scratch']
  %s0 = inlined_call_operand.hbm [shape: f32[2,32,256], index: 0, kind: input, shape index: {}]
  %s1 = inlined_call_operand.hbm [shape: f32[3], index: 1, kind: input, shape index: {}]
  %s2 = inlined_call_operand.hbm [shape: f32[2,32,256], index: 2, kind: output, shape index: {}]
  %s3 = sld [smem:[#allocation0]]
  $region49: #{tpu_custom_call.1} parent=0
    _
  %s5 = ssub.s32 1, %s3
  %s6 = scalar_select 0, %s5, %s3
  $region1: #{tpu_custom_call.1} parent=0
    #allocation2 [shape = 'u8[65536]{0}', space=vmem, size = 0x10000, scoped, tag = 'input window, operand 0']
    #allocation3 [shape = 's32[2]{0}', space=sflag, size = 0x8, scoped, tag = 'scoped memory for tpu_custom_call.1']
    #allocation4 [shape = 's32[2]{0}', space=sflag, size = 0x8, scoped, tag = 'scoped memory for tpu_custom_call.1']
    #allocation5 [shape = 's32[2]{0}', space=sflag, size = 0x8, scoped, tag = 'scoped memory for tpu_custom_call.1']
    #allocation6 [shape = 'u8[512]{0}', space=smem, size = 0x200, scoped, tag = 'input window, operand 1, single buffered']
    #allocation7 [shape = 'u8[65536]{0}', space=vmem, size = 0x10000, scoped, tag = 'output window, operand 0']
    %7 = vsyncpa [#allocation3], 0
    %s8 = scalar_lea.sflag [#allocation3], 1
    %9 = vsyncpa %s8, 0
    %10 = vsyncpa [#allocation5], 0
    %11 = vsyncpa [#allocation4], 0
    %s12 = scalar_lea.sflag [#allocation4], 1
    %13 = vsyncpa %s12, 0
    loop: start=0, step=1, limit=4
    $region2: #{tpu_custom_call.1} parent=1 // loop_pre_header
      _
    $region3: #{tpu_custom_call.1} parent=1 // loop_header
      %s15 = sphi 0, %s19
      %p16 = scmp.ge.s32.totalorder %s15, 4
      %s25 = sphi 0, %s27
      %s28 = sphi 0, %s25
      %s29 = sphi 0, %s28
      %s45 = sphi 0, %s29
      %s49 = sphi 0, %s49
      %s51 = sphi 0, %s49
      %s52 = sphi 0, %s51
      %s66 = sphi 0, %s52
      %s72 = sphi 0, %s74
      %s75 = sphi 0, %s72
      %s76 = sphi 0, %s75
      %s92 = sphi 0, %s76
    $region4: #{tpu_custom_call.1} parent=1 // loop_header_branch
      %18 = sbr.rel (%p16) target = $region8
    $region5: #{tpu_custom_call.1} parent=1 // loop_body
      %s20 = ssub.s32 %s15, 1
      %s21 = ssub.s32 %s15, 2
      %s22 = sadd.s32 %s15, 1
      %s23 = ssub.s32 %s15, %s22
      %p24 = scmp.eq.s32.totalorder %s23, 0
      %s26 = sadd.s32 %s25, 1
      %s27 = scalar_select %p24, %s25, %s26
      %p30 = pneg %p24
      %p31 = scmp.eq.s32.totalorder %s15, 1
      %p32 = por %p30, %p31
      %p33 = scmp.ne.s32.totalorder %s25, %s28
      %p34 = scmp.eq.s32.totalorder %s15, 0
      %p35 = por %p33, %p34
      %p36 = scmp.ne.s32.totalorder %s25, %s28
      %p37 = scmp.eq.s32.totalorder %s20, 1
      %p38 = por %p36, %p37
      %p39 = scmp.ne.s32.totalorder %s28, %s29
      %p40 = scmp.eq.s32.totalorder %s20, 0
      %p41 = por %p39, %p40
      %p42 = scmp.ne.s32.totalorder %s28, %s29
      %p43 = scmp.eq.s32.totalorder %s21, 1
      %p44 = por %p42, %p43
      %p46 = scmp.ne.s32.totalorder %s29, %s45
      %p47 = scmp.eq.s32.totalorder %s21, 0
      %p48 = por %p46, %p47
      %s50 = sadd.s32 %s49, 1
      %p53 = scmp.eq.s32.totalorder %s15, 1
      %p54 = scmp.ne.s32.totalorder %s49, %s51
      %p55 = scmp.eq.s32.totalorder %s15, 0
      %p56 = por %p54, %p55
      %p57 = scmp.ne.s32.totalorder %s49, %s51
      %p58 = scmp.eq.s32.totalorder %s20, 1
      %p59 = por %p57, %p58
      %p60 = scmp.ne.s32.totalorder %s51, %s52
      %p61 = scmp.eq.s32.totalorder %s20, 0
      %p62 = por %p60, %p61
      %p63 = scmp.ne.s32.totalorder %s51, %s52
      %p64 = scmp.eq.s32.totalorder %s21, 1
      %p65 = por %p63, %p64
      %p67 = scmp.ne.s32.totalorder %s52, %s66
      %p68 = scmp.eq.s32.totalorder %s21, 0
      %p69 = por %p67, %p68
      %s70 = ssub.s32 %s15, %s22
      %p71 = scmp.eq.s32.totalorder %s70, 0
      %s73 = sadd.s32 %s72, 1
      %s74 = scalar_select %p71, %s72, %s73
      %p77 = pneg %p71
      %p78 = scmp.eq.s32.totalorder %s15, 1
      %p79 = por %p77, %p78
      %p80 = scmp.ne.s32.totalorder %s72, %s75
      %p81 = scmp.eq.s32.totalorder %s15, 0
      %p82 = por %p80, %p81
      %p83 = scmp.ne.s32.totalorder %s72, %s75
      %p84 = scmp.eq.s32.totalorder %s20, 1
      %p85 = por %p83, %p84
      %p86 = scmp.ne.s32.totalorder %s75, %s76
      %p87 = scmp.eq.s32.totalorder %s20, 0
      %p88 = por %p86, %p87
      %p89 = scmp.ne.s32.totalorder %s75, %s76
      %p90 = scmp.eq.s32.totalorder %s21, 1
      %p91 = por %p89, %p90
      %p93 = scmp.ne.s32.totalorder %s76, %s92
      %p94 = scmp.eq.s32.totalorder %s21, 0
      %p95 = por %p93, %p94
      %p96 = scmp.le.s32.totalorder 1, %s15
      %p97 = scmp.lt.s32.totalorder %s15, 3
      %p98 = pnand %p96, %p97
      %p99 = pneg %p98
      // Predicated region
      $region9: #{tpu_custom_call.1} parent=5 // pred_check
        _
      $region10: #{tpu_custom_call.1} parent=5 // pred_check_branch
        %101 = sbr.rel (%p98) target = $region12
      $region11: #{tpu_custom_call.1} parent=5 // pred_region
        %s102 = ssub.s32 %s15, 1
        // Predicated region
        $region13: #{tpu_custom_call.1} parent=11 // pred_check
          %p103 = pneg %p62
        $region14: #{tpu_custom_call.1} parent=11 // pred_check_branch
          %105 = sbr.rel (%p103) target = $region16
        $region15: #{tpu_custom_call.1} parent=11 // pred_region
          %107 = vsyncadd [#allocation5], 0
          %s109 = sshll.u32 %s1, 4
          %s110 = int_to_ptr.hbm [resolvable:$true] %s109
          %112 = dma.hbm_to_smem %s110, 16, [#allocation6], [#allocation5]
        $region16: #{tpu_custom_call.1} parent=11 // pred_fallthru
          _
      $region12: #{tpu_custom_call.1} parent=5 // pred_fallthru
        _
      %p113 = scmp.lt.s32.totalorder %s15, 2
      // Predicated region
      $region17: #{tpu_custom_call.1} parent=5 // pred_check
        %p114 = pneg %p113
      $region18: #{tpu_custom_call.1} parent=5 // pred_check_branch
        %116 = sbr.rel (%p114) target = $region20
      $region19: #{tpu_custom_call.1} parent=5 // pred_region
        // Predicated region
        $region21: #{tpu_custom_call.1} parent=19 // pred_check
          %p117 = pneg %p35
        $region22: #{tpu_custom_call.1} parent=19 // pred_check_branch
          %119 = sbr.rel (%p117) target = $region24
        $region23: #{tpu_custom_call.1} parent=19 // pred_region
          %s120 = sand.u32 %s25, 1
          %s121 = scalar_lea.sflag [#allocation3], %s120
          %s122 = sand.u32 %s25, 1
          %s123 = smul.addr %s122, 64
          %s124 = scalar_lea.vmem [#allocation2], %s123
          %126 = vsyncadd %s121, 0
          %s127 = smul.addr %s15, 8
          %s128 = smul.addr %s127, 8
          %s129 = scalar_lea.hbm %s0, %s128
          %s130 = sshll.u32 %s129, 4
          %s131 = int_to_ptr.hbm [resolvable:$true] %s130
          %s132 = sshll.u32 %s124, 4
          %s133 = int_to_ptr.vmem [resolvable:$true] %s132
          %138 = dma.hbm_to_vmem [thread:$0]  %s131, 1024, %s133, %s121, 256, 256, 16
        $region24: #{tpu_custom_call.1} parent=19 // pred_fallthru
          _
      $region20: #{tpu_custom_call.1} parent=5 // pred_fallthru
        _
      %p139 = scmp.le.s32.totalorder 1, %s15
      %p140 = scmp.lt.s32.totalorder %s15, 3
      %p141 = pnand %p139, %p140
      %p142 = pneg %p141
      // Predicated region
      $region25: #{tpu_custom_call.1} parent=5 // pred_check
        _
      $region26: #{tpu_custom_call.1} parent=5 // pred_check_branch
        %144 = sbr.rel (%p141) target = $region28
      $region27: #{tpu_custom_call.1} parent=5 // pred_region
        %s145 = ssub.s32 %s15, 1
        %s146 = sand.u32 %s28, 1
        %s147 = scalar_lea.sflag [#allocation3], %s146
        %s148 = sand.u32 %s28, 1
        %s149 = smul.addr %s148, 64
        %s150 = scalar_lea.vmem [#allocation2], %s149
        // Predicated region
        $region29: #{tpu_custom_call.1} parent=27 // pred_check
          %p151 = pneg %p41
        $region30: #{tpu_custom_call.1} parent=27 // pred_check_branch
          %153 = sbr.rel (%p151) target = $region32
        $region31: #{tpu_custom_call.1} parent=27 // pred_region
          %155 = dma.done %s147, 1024
        $region32: #{tpu_custom_call.1} parent=27 // pred_fallthru
          _
        // Predicated region
        $region33: #{tpu_custom_call.1} parent=27 // pred_check
          %p156 = pneg %p62
        $region34: #{tpu_custom_call.1} parent=27 // pred_check_branch
          %158 = sbr.rel (%p156) target = $region36
        $region35: #{tpu_custom_call.1} parent=27 // pred_region
          %160 = dma.done [#allocation5], 16
        $region36: #{tpu_custom_call.1} parent=27 // pred_fallthru
          _
        %161 = sfence
        %s162 = sand.u32 %s28, 1
        %s163 = scalar_lea.sflag [#allocation3], %s162
        %s164 = sand.u32 %s28, 1
        %s165 = smul.addr %s164, 64
        %s166 = scalar_lea.vmem [#allocation2], %s165
        %p167 = pneg %p41
        %p168 = pneg %p38
        %p169 = pneg %p62
        %p170 = pneg %p59
        %p171 = pneg %p88
        %p172 = pneg %p85
        %s173 = sand.u32 %s75, 1
        %s174 = scalar_lea.sflag [#allocation4], %s173
        %s175 = sand.u32 %s75, 1
        %s176 = smul.addr %s175, 64
        %s177 = scalar_lea.vmem [#allocation7], %s176
        %v178 = vld [vmem:[%s150] sm:$0xff]
        %v179 = vld [vmem:[%s150 + $0x8] sm:$0xff]
        %v180 = vld [vmem:[%s150 + $0x10] sm:$0xff]
        %v181 = vld [vmem:[%s150 + $0x18] sm:$0xff]
        %v182 = vld [vmem:[%s150 + $0x20] sm:$0xff]
        %v183 = vld [vmem:[%s150 + $0x28] sm:$0xff]
        %v184 = vld [vmem:[%s150 + $0x30] sm:$0xff]
        %v185 = vld [vmem:[%s150 + $0x38] sm:$0xff]
        %v186 = vadd.f32 %v178, %v179
        %187 = vadd.xlane.f32.xlu0 %v186
        %v188 = vpop.xlane.xlu0 %187
        %v189 = vadd.f32 %v180, %v181
        %190 = vadd.xlane.f32.xlu0 %v189
        %v191 = vpop.xlane.xlu0 %190
        %v192 = vadd.f32 %v182, %v183
        %193 = vadd.xlane.f32.xlu0 %v192
        %v194 = vpop.xlane.xlu0 %193
        %v195 = vadd.f32 %v184, %v185
        %196 = vadd.xlane.f32.xlu0 %v195
        %v197 = vpop.xlane.xlu0 %196
        %v198 = vmul.f32 %v188, 0.00390625
        %v199 = vmul.f32 %v191, 0.00390625
        %v200 = vmul.f32 %v194, 0.00390625
        %v201 = vmul.f32 %v197, 0.00390625
        %vm206 = vcmask 1040384
        %v207 = vrot.slane %v198, 7
        %v208 = vrot.slane %v199, 7
        %v209 = vsel %vm206, %v207, %v208
        %v210 = vrot.slane %v200, 7
        %v211 = vsel %vm206, %v208, %v210
        %v212 = vrot.slane %v201, 7
        %v213 = vsel %vm206, %v210, %v212
        %v219 = vsel %vm206, 0.0, %v207
        %v220 = vsel %vm206, %v212, 0.0
        %s221 = sld [smem:[#allocation6]]
        %v222 = vstv %s221
        %v223 = vmul.f32 %v222, %v219
        %v224 = vmul.f32 %v222, %v209
        %v225 = vmul.f32 %v222, %v211
        %v226 = vmul.f32 %v222, %v213
        %s227 = sld [smem:[#allocation6 + $0x1]]
        %v228 = vstv %s227
        %v229 = vmul.f32 %v228, %v219
        %v230 = vmul.f32 %v228, %v209
        %v231 = vmul.f32 %v228, %v211
        %v232 = vmul.f32 %v228, %v213
        %v233 = vmul.f32 %v228, %v220
        %vm239 = vcmask 1046528
        %v240 = vrot.slane %v229, 1
        %v241 = vrot.slane %v230, 1
        %v242 = vsel %vm239, %v240, %v241
        %v243 = vrot.slane %v231, 1
        %v244 = vsel %vm239, %v241, %v243
        %v245 = vrot.slane %v232, 1
        %v246 = vsel %vm239, %v243, %v245
        %v247 = vrot.slane %v233, 1
        %v248 = vsel %vm239, %v245, %v247
        %v253 = vadd.f32 %v223, %v242
        %v254 = vadd.f32 %v224, %v244
        %v255 = vadd.f32 %v225, %v246
        %v256 = vadd.f32 %v226, %v248
        %s257 = sld [smem:[#allocation6 + $0x2]]
        %v258 = vstv %s257
        %v259 = vmul.f32 %v258, %v219
        %v260 = vmul.f32 %v258, %v209
        %v261 = vmul.f32 %v258, %v211
        %v262 = vmul.f32 %v258, %v213
        %v263 = vmul.f32 %v258, %v220
        %vm269 = vcmask 1045504
        %v270 = vrot.slane %v259, 2
        %v271 = vrot.slane %v260, 2
        %v272 = vsel %vm269, %v270, %v271
        %v273 = vrot.slane %v261, 2
        %v274 = vsel %vm269, %v271, %v273
        %v275 = vrot.slane %v262, 2
        %v276 = vsel %vm269, %v273, %v275
        %v277 = vrot.slane %v263, 2
        %v278 = vsel %vm269, %v275, %v277
        %v283 = vadd.f32 %v253, %v272
        %v284 = vadd.f32 %v254, %v274
        %v285 = vadd.f32 %v255, %v276
        %v286 = vadd.f32 %v256, %v278
        %v287 = vxor.u32 %v283, 2147483648
        %v288 = vxor.u32 %v284, 2147483648
        %v289 = vxor.u32 %v285, 2147483648
        %v290 = vxor.u32 %v286, 2147483648
        %v291 = vmul.f32 %v287, 1.442695
        %v292 = vpow.pop %v291
        %v293 = vmul.f32 %v288, 1.442695
        %v294 = vpow.pop %v293
        %v295 = vmul.f32 %v289, 1.442695
        %v296 = vpow.pop %v295
        %v297 = vmul.f32 %v290, 1.442695
        %v298 = vpow.pop %v297
        %v299 = vadd.f32 %v292, 1.0
        %v300 = vadd.f32 %v294, 1.0
        %v301 = vadd.f32 %v296, 1.0
        %v302 = vadd.f32 %v298, 1.0
        %v303 = vrcp.pop %v299
        %v304 = vmul.f32 %v299, %v303
        %v305 = vsub.f32 1.0, %v304
        %v306 = vmul.f32 %v303, %v305
        %v307 = vadd.f32 %v303, %v306
        %vm308 = vweird.f32 %v299
        %vm309 = vweird.f32 %v303
        %vm310 = vmor %vm308, %vm309
        %v311 = vsel %vm310, %v303, %v307
        %v312 = vand.u32 2147483647, %v299
        %vm313 = vcmp.eq.f32.partialorder %v312, 8.507059e+37
        %v314 = vand.u32 %v299, 2147483648
        %v315 = vor.u32 1.1754944e-38, %v314
        %v316 = vsel %vm313, %v315, %v311
        %v317 = vmul.f32 1.0, %v316
        %v318 = vrcp.pop %v300
        %v319 = vmul.f32 %v300, %v318
        %v320 = vsub.f32 1.0, %v319
        %v321 = vmul.f32 %v318, %v320
        %v322 = vadd.f32 %v318, %v321
        %vm323 = vweird.f32 %v300
        %vm324 = vweird.f32 %v318
        %vm325 = vmor %vm323, %vm324
        %v326 = vsel %vm325, %v318, %v322
        %v327 = vand.u32 2147483647, %v300
        %vm328 = vcmp.eq.f32.partialorder %v327, 8.507059e+37
        %v329 = vand.u32 %v300, 2147483648
        %v330 = vor.u32 1.1754944e-38, %v329
        %v331 = vsel %vm328, %v330, %v326
        %v332 = vmul.f32 1.0, %v331
        %v333 = vrcp.pop %v301
        %v334 = vmul.f32 %v301, %v333
        %v335 = vsub.f32 1.0, %v334
        %v336 = vmul.f32 %v333, %v335
        %v337 = vadd.f32 %v333, %v336
        %vm338 = vweird.f32 %v301
        %vm339 = vweird.f32 %v333
        %vm340 = vmor %vm338, %vm339
        %v341 = vsel %vm340, %v333, %v337
        %v342 = vand.u32 2147483647, %v301
        %vm343 = vcmp.eq.f32.partialorder %v342, 8.507059e+37
        %v344 = vand.u32 %v301, 2147483648
        %v345 = vor.u32 1.1754944e-38, %v344
        %v346 = vsel %vm343, %v345, %v341
        %v347 = vmul.f32 1.0, %v346
        %v348 = vrcp.pop %v302
        %v349 = vmul.f32 %v302, %v348
        %v350 = vsub.f32 1.0, %v349
        %v351 = vmul.f32 %v348, %v350
        %v352 = vadd.f32 %v348, %v351
        %vm353 = vweird.f32 %v302
        %vm354 = vweird.f32 %v348
        %vm355 = vmor %vm353, %vm354
        %v356 = vsel %vm355, %v348, %v352
        %v357 = vand.u32 2147483647, %v302
        %vm358 = vcmp.eq.f32.partialorder %v357, 8.507059e+37
        %v359 = vand.u32 %v302, 2147483648
        %v360 = vor.u32 1.1754944e-38, %v359
        %v361 = vsel %vm358, %v360, %v356
        %v362 = vmul.f32 1.0, %v361
        %364 = vset.pattern.permute.xlu0 0
        %365 = vperm.xlu0 %364, %v317
        %v366 = vpop.permute.xlu0 %365
        %369 = vset.pattern.permute.xlu0 0
        %370 = vperm.xlu0 %369, %v332
        %v371 = vpop.permute.xlu0 %370
        %374 = vset.pattern.permute.xlu0 0
        %375 = vperm.xlu0 %374, %v347
        %v376 = vpop.permute.xlu0 %375
        %379 = vset.pattern.permute.xlu0 0
        %380 = vperm.xlu0 %379, %v362
        %v381 = vpop.permute.xlu0 %380
        %v383 = vmul.f32 %v178, %v366
        %v384 = vmul.f32 %v179, %v366
        %v385 = vmul.f32 %v180, %v371
        %v386 = vmul.f32 %v181, %v371
        %v387 = vmul.f32 %v182, %v376
        %v388 = vmul.f32 %v183, %v376
        %v389 = vmul.f32 %v184, %v381
        %v390 = vmul.f32 %v185, %v381
        %391 = vst [vmem:[%s177] sm:$0xff] %v383
        %392 = vst [vmem:[%s177 + $0x8] sm:$0xff] %v384
        %393 = vst [vmem:[%s177 + $0x10] sm:$0xff] %v385
        %394 = vst [vmem:[%s177 + $0x18] sm:$0xff] %v386
        %395 = vst [vmem:[%s177 + $0x20] sm:$0xff] %v387
        %396 = vst [vmem:[%s177 + $0x28] sm:$0xff] %v388
        %397 = vst [vmem:[%s177 + $0x30] sm:$0xff] %v389
        %398 = vst [vmem:[%s177 + $0x38] sm:$0xff] %v390
        %s399 = sand.u32 %s75, 1
        %s400 = scalar_lea.sflag [#allocation4], %s399
        %s401 = sand.u32 %s75, 1
        %s402 = smul.addr %s401, 64
        %s403 = scalar_lea.vmem [#allocation7], %s402
        // Predicated region
        $region37: #{tpu_custom_call.1} parent=27 // pred_check
          %p404 = pneg %p85
        $region38: #{tpu_custom_call.1} parent=27 // pred_check_branch
          %406 = sbr.rel (%p404) target = $region40
        $region39: #{tpu_custom_call.1} parent=27 // pred_region
          %408 = vsyncadd %s400, 0
          %s409 = smul.addr %s20, 8
          %s410 = smul.addr %s409, 8
          %s411 = scalar_lea.hbm %s2, %s410
          %s412 = sshll.u32 %s403, 4
          %s413 = int_to_ptr.vmem [resolvable:$true] %s412
          %s414 = sshll.u32 %s411, 4
          %s415 = int_to_ptr.hbm [resolvable:$true] %s414
          %420 = dma.vmem_to_hbm [thread:$0]  %s413, 1024, %s415, %s400, 256, 256, 16
        $region40: #{tpu_custom_call.1} parent=27 // pred_fallthru
          _
      $region28: #{tpu_custom_call.1} parent=5 // pred_fallthru
        _
      %p421 = scmp.le.s32.totalorder 2, %s15
      // Predicated region
      $region41: #{tpu_custom_call.1} parent=5 // pred_check
        %p422 = pneg %p421
      $region42: #{tpu_custom_call.1} parent=5 // pred_check_branch
        %424 = sbr.rel (%p422) target = $region44
      $region43: #{tpu_custom_call.1} parent=5 // pred_region
        %s425 = ssub.s32 %s15, 2
        // Predicated region
        $region45: #{tpu_custom_call.1} parent=43 // pred_check
          %p426 = pneg %p91
        $region46: #{tpu_custom_call.1} parent=43 // pred_check_branch
          %428 = sbr.rel (%p426) target = $region48
        $region47: #{tpu_custom_call.1} parent=43 // pred_region
          %s429 = sand.u32 %s76, 1
          %s430 = scalar_lea.sflag [#allocation4], %s429
          %s431 = sand.u32 %s76, 1
          %s432 = smul.addr %s431, 64
          %s433 = scalar_lea.vmem [#allocation7], %s432
          %435 = dma.done %s430, 1024
        $region48: #{tpu_custom_call.1} parent=43 // pred_fallthru
          _
      $region44: #{tpu_custom_call.1} parent=5 // pred_fallthru
        _
    $region6: #{tpu_custom_call.1} parent=1 // loop_footer
      %s19 = sadd.s32 1, %s15
    $region7: #{tpu_custom_call.1} parent=1 // loop_footer_branch
      %14 = sbr.rel target = $region3
    $region8: #{tpu_custom_call.1} parent=1 // loop_exit
      _
    %436 = vsyncpa [#allocation3], 1
    %s437 = scalar_lea.sflag [#allocation3], 1
    %438 = vsyncpa %s437, 1
    %439 = vsyncpa [#allocation4], 1
    %s440 = scalar_lea.sflag [#allocation4], 1
    %441 = vsyncpa %s440, 1
    %442 = vsyncpa [#allocation5], 1
    %s443 = scalar_lea.sflag [#allocation5], 1
    %444 = vsyncpa %s443, 1

</llo_original>
